<compile_context>
chip_gen: v6e
topology: v6e:2x2x1
jax: 0.10.0
libtpu: 0.0.40
codegen_flags: <defaults>
</compile_context>

<pallas_src>
import jax
import jax.numpy as jnp
import numpy as np
from jax.experimental import pallas as pl
from jax.experimental.pallas import tpu as pltpu


# ----------------------------------------------------------------------------
# Kernel 1: language projection + agg_lang_feat (masked average pooling)
#   token_x = last_hidden @ W_proj                       (B, L, Dp)
#   pooled  = sum_l(token_x * mask) / sum_l(mask)        (B, Dp)
# One grid step handles a block of Bb batches: a single (Bb*L, Dl)@(Dl, Dp)
# MXU matmul plus a small VPU/XLU weighted reduction into a dense (Bb, Dp)
# tile (it rides in the matmul's VALU/XLU slack).
# ----------------------------------------------------------------------------
def _lang_proj_pool_kernel(tok_ref, mask_ref, w_ref, proj_ref, pool_ref):
    bb, L, dl = tok_ref.shape
    x2 = tok_ref[...].reshape(bb * L, dl)                 # (Bb*L, Dl)  bf16
    w = w_ref[...]                                        # (Dl, Dp)    bf16
    proj2 = jnp.dot(x2, w, preferred_element_type=jnp.float32)  # MXU, f32 acc
    proj3 = proj2.reshape(proj_ref.shape)                 # (Bb, L, Dp) f32
    proj_ref[...] = proj3.astype(proj_ref.dtype)

    # Mask already carries the zero-guarded 1/sum(mask) (folded on the host),
    # so the masked mean is a weighted sum.  Output is a dense (Bb, Dp) slab.
    m = mask_ref[...]                                     # (Bb, L, 1)  f32
    pool_ref[...] = jnp.sum(proj3 * m, axis=1).astype(pool_ref.dtype)


def lang_proj_and_pool(last_hidden, attn_mask, w_proj, *, block_b=None):
    """last_hidden: (B, L, Dl); attn_mask: (B, L) of {0,1}; w_proj: (Dl, Dp).

    Returns (token_x (B, L, Dp) f32, pooled (B, Dp) f32) matching
        token_x = last_hidden @ w_proj
        pooled  = agg_lang_feat(token_x, attn_mask, 'average')
    """
    B, L, Dl = last_hidden.shape
    Dp = w_proj.shape[1]

    if block_b is None:
        block_b = max(1, min(B, max(1, 512 // L)))        # ~512 matmul rows/step
        if block_b >= B and B > 1:                        # keep >=2 grid steps
            block_b = pl.cdiv(B, 2)                       # (v7x: 2 TensorCores)
    block_b = max(1, min(block_b, B))
    grid_b = pl.cdiv(B, block_b)                          # ragged tail is padded

    # Fold the (zero-guarded) 1/sum(mask) normalization into the mask itself.
    mask_f = attn_mask.astype(jnp.float32)
    denom = jnp.maximum(mask_f.sum(axis=-1, keepdims=True), 1.0)
    mask3 = (mask_f / denom).reshape(B, L, 1)

    tok_bf16 = last_hidden.astype(jnp.bfloat16)
    w_bf16 = w_proj.astype(jnp.bfloat16)

    proj, pooled = pl.pallas_call(
        _lang_proj_pool_kernel,
        out_shape=(
            jax.ShapeDtypeStruct((B, L, Dp), jnp.float32),
            jax.ShapeDtypeStruct((B, Dp), jnp.float32),
        ),
        grid_spec=pltpu.PrefetchScalarGridSpec(
            num_scalar_prefetch=0,
            grid=(grid_b,),
            in_specs=[
                pl.BlockSpec((block_b, L, Dl), lambda i: (i, 0, 0)),
                pl.BlockSpec((block_b, L, 1), lambda i: (i, 0, 0)),
                pl.BlockSpec((Dl, Dp), lambda i: (0, 0)),      # resident weight
            ],
            out_specs=[
                pl.BlockSpec((block_b, L, Dp), lambda i: (i, 0, 0)),
                pl.BlockSpec((block_b, Dp), lambda i: (i, 0)),
            ],
        ),
        compiler_params=pltpu.CompilerParams(
            dimension_semantics=("parallel",)),
    )(tok_bf16, mask3, w_bf16)
    return proj, pooled


# ----------------------------------------------------------------------------
# Kernel 2: mask spatial embedding projection (no host-side feature transpose)
#   torch: src = feat.permute(2,3,0,1) @ mask_sptial_embed[i]   -> (H, W, B, C)
#   here:  out[b, d, hw] = sum_c feat[b, c, hw] * embed[c, d]
#          computed tile-wise as (embed^T) @ feat_b on the MXU, so the big
#          NCHW feature map is read exactly once from HBM in its native layout.
# ----------------------------------------------------------------------------
def _spatial_embed_kernel(x_ref, et_ref, o_ref):
    # x:  (1, Cin, thw)  bf16 tile of the NCHW feature map
    # et: (Cout, Cin)    bf16 (embed transposed on the host -- tiny parameter)
    # out tile: (1, Cout, thw) f32, lane-dense (thw is 128-multiple / full dim)
    o_ref[0] = jnp.dot(
        et_ref[...], x_ref[0], preferred_element_type=jnp.float32
    ).astype(o_ref.dtype)


def spatial_embed_project(feat_nchw, embed, *, tile_hw=512):
    """feat_nchw: (B, Cin, H, W); embed: (Cin, Cout).

    Returns (B, Cout, H, W) f32 with
        out[b, d, h, w] = sum_c feat[b, c, h, w] * embed[c, d],
    i.e. out.transpose(2, 3, 0, 1) equals feat.permute(2,3,0,1) @ embed
    (the torch (H, W, B, Cout) layout).  Consumers are expected to use the
    NCHW layout directly; no full-array HBM transpose is performed.
    """
    B, Cin, H, W = feat_nchw.shape
    Cout = embed.shape[1]
    HW = H * W

    if HW <= tile_hw:
        thw = HW                                    # full dim: always legal
    else:
        thw = max(128, (tile_hw // 128) * 128)      # lane-aligned; cdiv pads tail
    grid_hw = pl.cdiv(HW, thw)

    feat3 = feat_nchw.reshape(B, Cin, HW).astype(jnp.bfloat16)  # free reshape
    embed_t = embed.T.astype(jnp.bfloat16)                      # tiny (Cout,Cin)

    out = pl.pallas_call(
        _spatial_embed_kernel,
        out_shape=jax.ShapeDtypeStruct((B, Cout, HW), jnp.float32),
        grid_spec=pltpu.PrefetchScalarGridSpec(
            num_scalar_prefetch=0,
            grid=(B, grid_hw),
            in_specs=[
                pl.BlockSpec((1, Cin, thw), lambda b, j: (b, 0, j)),
                pl.BlockSpec((Cout, Cin), lambda b, j: (0, 0)),  # resident
            ],
            out_specs=pl.BlockSpec((1, Cout, thw), lambda b, j: (b, 0, j)),
        ),
        compiler_params=pltpu.CompilerParams(
            dimension_semantics=("parallel", "parallel")),
    )(feat3, embed_t)
    return out.reshape(B, Cout, H, W)


# TODO(synk): point_sample (bilinear grid-sample at ragged prompt points),
# rand_sample's torch.randperm gather, the gather_all_classtoken boolean-mask
# gather, and the data-dependent pn_indicator scatter-add have no clean
# static-BlockSpec Pallas equivalent and are left to host-side glue / future
# work (as are the external backbone / CLIP / pixel-decoder / predictor
# sub-modules).


if __name__ == "__main__":
    # Small but tile-friendly stand-in shapes (real model: LANG_DIM=512,
    # DIM_PROJ=256, hidden_dim=256, L=MAX_QUERY_LEN, B_TXT=#class names).
    B_TXT, L, LANG_DIM, DIM_PROJ = 16, 8, 128, 128
    B_IMG, C, H, W = 2, 128, 16, 16

    key = jax.random.PRNGKey(0)
    k_tok, k_proj, k_feat, k_embed = jax.random.split(key, 4)

    # Stand-in for text_encoder(...)['last_hidden_state'].
    last_hidden = jax.random.normal(k_tok, (B_TXT, L, LANG_DIM), jnp.float32)
    # Attention mask with a varying number of valid tokens per class name.
    lengths = (jnp.arange(B_TXT) % 6) + 3
    attn_mask = (jnp.arange(L)[None, :] < lengths[:, None]).astype(jnp.float32)

    # Parameters (same init style as the module, reduced width).
    lang_projection = jax.random.uniform(k_proj, (LANG_DIM, DIM_PROJ), jnp.float32)
    mask_sptial_embed0 = 0.02 * jax.random.truncated_normal(
        k_embed, -2.0, 2.0, (C, C), jnp.float32)

    # Stand-in for one multi_scale_features[i] from the pixel decoder (NCHW).
    feat = jax.random.normal(k_feat, (B_IMG, C, H, W), jnp.float32)

    # ---- run kernels ----
    token_x, class_embeddings = lang_proj_and_pool(
        last_hidden, attn_mask, lang_projection)
    src_bchw = spatial_embed_project(feat, mask_sptial_embed0)
    jax.block_until_ready((token_x, class_embeddings, src_bchw))

    # ---- reference checks (plain JAX with the same bf16 input rounding) ----
    lh = last_hidden.astype(jnp.bfloat16).astype(jnp.float32)
    wp = lang_projection.astype(jnp.bfloat16).astype(jnp.float32)
    tok_ref = jnp.einsum("bld,dp->blp", lh, wp)
    pool_ref = (tok_ref * attn_mask[:, :, None]).sum(1) / jnp.maximum(
        attn_mask.sum(-1), 1.0)[:, None]

    ft = feat.astype(jnp.bfloat16).astype(jnp.float32)
    em = mask_sptial_embed0.astype(jnp.bfloat16).astype(jnp.float32)
    # torch layout: feat.permute(2,3,0,1) @ embed -> (H, W, B, Cout)
    feat_ref_hwbc = jnp.einsum(
        "hwbc,cd->hwbd", jnp.transpose(ft, (2, 3, 0, 1)), em)
    src_hwbc = jnp.transpose(src_bchw, (2, 3, 0, 1))

    assert np.allclose(np.asarray(token_x), np.asarray(tok_ref),
                       rtol=2e-3, atol=2e-3)
    assert np.allclose(np.asarray(class_embeddings), np.asarray(pool_ref),
                       rtol=2e-3, atol=2e-3)
    assert np.allclose(np.asarray(src_hwbc), np.asarray(feat_ref_hwbc),
                       rtol=2e-3, atol=2e-3)

    print("KERNEL_OK")
</pallas_src>

<mosaic_0001>
module attributes {stable_mosaic.version = 11 : i64} {
  func.func @_lang_proj_pool_kernel(%arg0: i32, %arg1: memref<8x8x128xbf16, #tpu.memory_space<vmem>>, %arg2: memref<8x8x1xf32, #tpu.memory_space<vmem>>, %arg3: memref<128x128xbf16, #tpu.memory_space<vmem>>, %arg4: memref<8x8x128xf32, #tpu.memory_space<vmem>>, %arg5: memref<8x128xf32, #tpu.memory_space<vmem>>) attributes {dimension_semantics = [#tpu.dimension_semantics<parallel>], iteration_bounds = array<i64: 2>, scalar_prefetch = 0 : i64, scratch_operands = 0 : i64, tpu.core_type = #tpu.core_type<tc>, window_params = [{transform_indices = @transform_0, window_bounds = array<i64: 8, 8, 128>}, {transform_indices = @transform_1, window_bounds = array<i64: 8, 8, 1>}, {pipeline_mode = #tpu.pipeline_mode<synchronous>, transform_indices = @transform_2, window_bounds = array<i64: 128, 128>}, {transform_indices = @transform_3, window_bounds = array<i64: 8, 8, 128>}, {transform_indices = @transform_4, window_bounds = array<i64: 8, 128>}]} {
    %c0 = arith.constant 0 : index
    %c0_0 = arith.constant 0 : index
    %c0_1 = arith.constant 0 : index
    %0 = vector.load %arg1[%c0, %c0_0, %c0_1] : memref<8x8x128xbf16, #tpu.memory_space<vmem>>, vector<8x8x128xbf16>
    %1 = vector.shape_cast %0 : vector<8x8x128xbf16> to vector<64x128xbf16>
    %c0_2 = arith.constant 0 : index
    %c0_3 = arith.constant 0 : index
    %2 = vector.load %arg3[%c0_2, %c0_3] : memref<128x128xbf16, #tpu.memory_space<vmem>>, vector<128x128xbf16>
    %cst = arith.constant dense<0.000000e+00> : vector<64x128xf32>
    %3 = tpu.matmul %1, %2, %cst {dimension_numbers = #tpu.dot_dimension_numbers<[1], [0], [0], [1], [0, 0, 1, 1], [], []>} : vector<64x128xbf16>, vector<128x128xbf16>, vector<64x128xf32> -> vector<64x128xf32>
    %4 = vector.shape_cast %3 : vector<64x128xf32> to vector<8x8x128xf32>
    %c0_4 = arith.constant 0 : index
    %c0_5 = arith.constant 0 : index
    %c0_6 = arith.constant 0 : index
    %5 = vector.load %arg4[%c0_4, %c0_5, %c0_6] : memref<8x8x128xf32, #tpu.memory_space<vmem>>, vector<8x8x128xf32>
    tpu.vector_store %arg4[%c0_4, %c0_5, %c0_6], %4 {strides = array<i32>} : memref<8x8x128xf32, #tpu.memory_space<vmem>>, vector<8x8x128xf32>,
    %c0_7 = arith.constant 0 : index
    %c0_8 = arith.constant 0 : index
    %c0_9 = arith.constant 0 : index
    %6 = vector.load %arg2[%c0_7, %c0_8, %c0_9] : memref<8x8x1xf32, #tpu.memory_space<vmem>>, vector<8x8x1xf32>
    %7 = vector.broadcast %6 : vector<8x8x1xf32> to vector<8x8x128xf32>
    %8 = arith.mulf %4, %7 : vector<8x8x128xf32>
    %cst_10 = arith.constant dense<0.000000e+00> : vector<8x128xf32>
    %9 = vector.multi_reduction <add>, %8, %cst_10 [1] : vector<8x8x128xf32> to vector<8x128xf32>
    %c0_11 = arith.constant 0 : index
    %c0_12 = arith.constant 0 : index
    %10 = vector.load %arg5[%c0_11, %c0_12] : memref<8x128xf32, #tpu.memory_space<vmem>>, vector<8x128xf32>
    tpu.vector_store %arg5[%c0_11, %c0_12], %9 {strides = array<i32>} : memref<8x128xf32, #tpu.memory_space<vmem>>, vector<8x128xf32>,
    return
  }
  func.func @transform_0(%arg0: i32) -> (i32, i32, i32) {
    %c0_i32 = arith.constant 0 : i32
    %c0_i32_0 = arith.constant 0 : i32
    %c0_i32_1 = arith.constant 0 : i32
    return %arg0, %c0_i32, %c0_i32_0 : i32, i32, i32
  }
  func.func @transform_1(%arg0: i32) -> (i32, i32, i32) {
    %c0_i32 = arith.constant 0 : i32
    %c0_i32_0 = arith.constant 0 : i32
    %c0_i32_1 = arith.constant 0 : i32
    return %arg0, %c0_i32, %c0_i32_0 : i32, i32, i32
  }
  func.func @transform_2(%arg0: i32) -> (i32, i32) {
    %c0_i32 = arith.constant 0 : i32
    %c0_i32_0 = arith.constant 0 : i32
    %c0_i32_1 = arith.constant 0 : i32
    return %c0_i32, %c0_i32_0 : i32, i32
  }
  func.func @transform_3(%arg0: i32) -> (i32, i32, i32) {
    %c0_i32 = arith.constant 0 : i32
    %c0_i32_0 = arith.constant 0 : i32
    %c0_i32_1 = arith.constant 0 : i32
    return %arg0, %c0_i32, %c0_i32_0 : i32, i32, i32
  }
  func.func @transform_4(%arg0: i32) -> (i32, i32) {
    %c0_i32 = arith.constant 0 : i32
    %c0_i32_0 = arith.constant 0 : i32
    return %arg0, %c0_i32 : i32, i32
  }
}

</mosaic_0001>

<llo_original>
// kernel: tpu_custom_call.1
$region0: #{tpu_custom_call.1}
  #allocation0 [shape = 'u32[]', space=smem, size = 0x4, offset = 0x4, fixed_abs, tag = 'smem constant byte address 0x4 - core index']
  #allocation1 [shape = 'u32[144,128]{1,0:T(1,128)}', space=vmem, size = 0x12000, scoped, tag = 'internal scratch']
  %s0 = inlined_call_operand.vmem [shape: bf16[16,8,128], index: 0, kind: input, shape index: {}]
  %s1 = inlined_call_operand.vmem [shape: f32[16,8,1], index: 1, kind: input, shape index: {}]
  %s2 = inlined_call_operand.vmem [shape: bf16[128,128], index: 2, kind: input, shape index: {}]
  %s3 = inlined_call_operand.hbm [shape: f32[16,8,128], index: 3, kind: output, shape index: {0}]
  %s4 = inlined_call_operand.hbm [shape: f32[16,128], index: 4, kind: output, shape index: {1}]
  %5 = xla_tuple %s3, %s4
  %s6 = sld [smem:[#allocation0]]
  $region53: #{tpu_custom_call.1} parent=0
    _
  %s8 = ssub.s32 1, %s6
  %s9 = scalar_select 0, %s8, %s6
  $region1: #{tpu_custom_call.1} parent=0
    #allocation2 [shape = 'u8[65536]{0}', space=vmem, size = 0x10000, scoped, tag = 'output window, operand 0']
    #allocation3 [shape = 's32[2]{0}', space=sflag, size = 0x8, scoped, tag = 'scoped memory for tpu_custom_call.1']
    #allocation4 [shape = 'u8[8192]{0}', space=vmem, size = 0x2000, scoped, tag = 'output window, operand 1']
    #allocation5 [shape = 's32[2]{0}', space=sflag, size = 0x8, scoped, tag = 'scoped memory for tpu_custom_call.1']
    %10 = vsyncpa [#allocation3], 0
    %s11 = scalar_lea.sflag [#allocation3], 1
    %12 = vsyncpa %s11, 0
    %13 = vsyncpa [#allocation5], 0
    %s14 = scalar_lea.sflag [#allocation5], 1
    %15 = vsyncpa %s14, 0
    loop: start=0, step=1, limit=4
    $region2: #{tpu_custom_call.1} parent=1 // loop_pre_header
      _
    $region3: #{tpu_custom_call.1} parent=1 // loop_header
      %s17 = sphi 0, %s21
      %p18 = scmp.ge.s32.totalorder %s17, 4
      %s27 = sphi 0, %s29
      %s30 = sphi 0, %s27
      %s31 = sphi 0, %s30
      %s47 = sphi 0, %s31
      %s53 = sphi 0, %s55
      %s56 = sphi 0, %s53
      %s57 = sphi 0, %s56
      %s73 = sphi 0, %s57
      %s77 = sphi 0, %s77
      %s79 = sphi 0, %s77
      %s80 = sphi 0, %s79
      %s94 = sphi 0, %s80
      %s100 = sphi 0, %s102
      %s103 = sphi 0, %s100
      %s104 = sphi 0, %s103
      %s120 = sphi 0, %s104
      %s126 = sphi 0, %s128
      %s129 = sphi 0, %s126
      %s130 = sphi 0, %s129
      %s146 = sphi 0, %s130
    $region4: #{tpu_custom_call.1} parent=1 // loop_header_branch
      %20 = sbr.rel (%p18) target = $region8
    $region5: #{tpu_custom_call.1} parent=1 // loop_body
      %s22 = ssub.s32 %s17, 1
      %s23 = ssub.s32 %s17, 2
      %s24 = sadd.s32 %s17, 1
      %s25 = ssub.s32 %s17, %s24
      %p26 = scmp.eq.s32.totalorder %s25, 0
      %s28 = sadd.s32 %s27, 1
      %s29 = scalar_select %p26, %s27, %s28
      %p32 = pneg %p26
      %p33 = scmp.eq.s32.totalorder %s17, 1
      %p34 = por %p32, %p33
      %p35 = scmp.ne.s32.totalorder %s27, %s30
      %p36 = scmp.eq.s32.totalorder %s17, 0
      %p37 = por %p35, %p36
      %p38 = scmp.ne.s32.totalorder %s27, %s30
      %p39 = scmp.eq.s32.totalorder %s22, 1
      %p40 = por %p38, %p39
      %p41 = scmp.ne.s32.totalorder %s30, %s31
      %p42 = scmp.eq.s32.totalorder %s22, 0
      %p43 = por %p41, %p42
      %p44 = scmp.ne.s32.totalorder %s30, %s31
      %p45 = scmp.eq.s32.totalorder %s23, 1
      %p46 = por %p44, %p45
      %p48 = scmp.ne.s32.totalorder %s31, %s47
      %p49 = scmp.eq.s32.totalorder %s23, 0
      %p50 = por %p48, %p49
      %s51 = ssub.s32 %s17, %s24
      %p52 = scmp.eq.s32.totalorder %s51, 0
      %s54 = sadd.s32 %s53, 1
      %s55 = scalar_select %p52, %s53, %s54
      %p58 = pneg %p52
      %p59 = scmp.eq.s32.totalorder %s17, 1
      %p60 = por %p58, %p59
      %p61 = scmp.ne.s32.totalorder %s53, %s56
      %p62 = scmp.eq.s32.totalorder %s17, 0
      %p63 = por %p61, %p62
      %p64 = scmp.ne.s32.totalorder %s53, %s56
      %p65 = scmp.eq.s32.totalorder %s22, 1
      %p66 = por %p64, %p65
      %p67 = scmp.ne.s32.totalorder %s56, %s57
      %p68 = scmp.eq.s32.totalorder %s22, 0
      %p69 = por %p67, %p68
      %p70 = scmp.ne.s32.totalorder %s56, %s57
      %p71 = scmp.eq.s32.totalorder %s23, 1
      %p72 = por %p70, %p71
      %p74 = scmp.ne.s32.totalorder %s57, %s73
      %p75 = scmp.eq.s32.totalorder %s23, 0
      %p76 = por %p74, %p75
      %s78 = sadd.s32 %s77, 1
      %p81 = scmp.eq.s32.totalorder %s17, 1
      %p82 = scmp.ne.s32.totalorder %s77, %s79
      %p83 = scmp.eq.s32.totalorder %s17, 0
      %p84 = por %p82, %p83
      %p85 = scmp.ne.s32.totalorder %s77, %s79
      %p86 = scmp.eq.s32.totalorder %s22, 1
      %p87 = por %p85, %p86
      %p88 = scmp.ne.s32.totalorder %s79, %s80
      %p89 = scmp.eq.s32.totalorder %s22, 0
      %p90 = por %p88, %p89
      %p91 = scmp.ne.s32.totalorder %s79, %s80
      %p92 = scmp.eq.s32.totalorder %s23, 1
      %p93 = por %p91, %p92
      %p95 = scmp.ne.s32.totalorder %s80, %s94
      %p96 = scmp.eq.s32.totalorder %s23, 0
      %p97 = por %p95, %p96
      %s98 = ssub.s32 %s17, %s24
      %p99 = scmp.eq.s32.totalorder %s98, 0
      %s101 = sadd.s32 %s100, 1
      %s102 = scalar_select %p99, %s100, %s101
      %p105 = pneg %p99
      %p106 = scmp.eq.s32.totalorder %s17, 1
      %p107 = por %p105, %p106
      %p108 = scmp.ne.s32.totalorder %s100, %s103
      %p109 = scmp.eq.s32.totalorder %s17, 0
      %p110 = por %p108, %p109
      %p111 = scmp.ne.s32.totalorder %s100, %s103
      %p112 = scmp.eq.s32.totalorder %s22, 1
      %p113 = por %p111, %p112
      %p114 = scmp.ne.s32.totalorder %s103, %s104
      %p115 = scmp.eq.s32.totalorder %s22, 0
      %p116 = por %p114, %p115
      %p117 = scmp.ne.s32.totalorder %s103, %s104
      %p118 = scmp.eq.s32.totalorder %s23, 1
      %p119 = por %p117, %p118
      %p121 = scmp.ne.s32.totalorder %s104, %s120
      %p122 = scmp.eq.s32.totalorder %s23, 0
      %p123 = por %p121, %p122
      %s124 = ssub.s32 %s17, %s24
      %p125 = scmp.eq.s32.totalorder %s124, 0
      %s127 = sadd.s32 %s126, 1
      %s128 = scalar_select %p125, %s126, %s127
      %p131 = pneg %p125
      %p132 = scmp.eq.s32.totalorder %s17, 1
      %p133 = por %p131, %p132
      %p134 = scmp.ne.s32.totalorder %s126, %s129
      %p135 = scmp.eq.s32.totalorder %s17, 0
      %p136 = por %p134, %p135
      %p137 = scmp.ne.s32.totalorder %s126, %s129
      %p138 = scmp.eq.s32.totalorder %s22, 1
      %p139 = por %p137, %p138
      %p140 = scmp.ne.s32.totalorder %s129, %s130
      %p141 = scmp.eq.s32.totalorder %s22, 0
      %p142 = por %p140, %p141
      %p143 = scmp.ne.s32.totalorder %s129, %s130
      %p144 = scmp.eq.s32.totalorder %s23, 1
      %p145 = por %p143, %p144
      %p147 = scmp.ne.s32.totalorder %s130, %s146
      %p148 = scmp.eq.s32.totalorder %s23, 0
      %p149 = por %p147, %p148
      %p150 = scmp.le.s32.totalorder 1, %s17
      %p151 = scmp.lt.s32.totalorder %s17, 3
      %p152 = pnand %p150, %p151
      %p153 = pneg %p152
      // Predicated region
      $region9: #{tpu_custom_call.1} parent=5 // pred_check
        _
      $region10: #{tpu_custom_call.1} parent=5 // pred_check_branch
        %155 = sbr.rel (%p152) target = $region12
      $region11: #{tpu_custom_call.1} parent=5 // pred_region
        %s156 = ssub.s32 %s17, 1
        // Predicated region
        $region13: #{tpu_custom_call.1} parent=11 // pred_check
          %p157 = pneg %p90
        $region14: #{tpu_custom_call.1} parent=11 // pred_check_branch
          %159 = sbr.rel (%p157) target = $region16
        $region15: #{tpu_custom_call.1} parent=11 // pred_region
          _
        $region16: #{tpu_custom_call.1} parent=11 // pred_fallthru
          _
      $region12: #{tpu_custom_call.1} parent=5 // pred_fallthru
        _
      %p160 = scmp.lt.s32.totalorder %s17, 2
      // Predicated region
      $region17: #{tpu_custom_call.1} parent=5 // pred_check
        %p161 = pneg %p160
      $region18: #{tpu_custom_call.1} parent=5 // pred_check_branch
        %163 = sbr.rel (%p161) target = $region20
      $region19: #{tpu_custom_call.1} parent=5 // pred_region
        // Predicated region
        $region21: #{tpu_custom_call.1} parent=19 // pred_check
          %p164 = pneg %p37
        $region22: #{tpu_custom_call.1} parent=19 // pred_check_branch
          %166 = sbr.rel (%p164) target = $region24
        $region23: #{tpu_custom_call.1} parent=19 // pred_region
          %s167 = smul.u32 8, %s17
          %p168 = scmp.lt.s32.totalorder %s167, 15
          %s169 = scalar_select %p168, %s167, 15
          %s170 = smul.addr %s169, 4
          %s171 = scalar_lea.vmem %s0, %s170
          %s172 = smul.u32 8, %s17
        $region24: #{tpu_custom_call.1} parent=19 // pred_fallthru
          _
        // Predicated region
        $region25: #{tpu_custom_call.1} parent=19 // pred_check
          %p173 = pneg %p63
        $region26: #{tpu_custom_call.1} parent=19 // pred_check_branch
          %175 = sbr.rel (%p173) target = $region28
        $region27: #{tpu_custom_call.1} parent=19 // pred_region
          %s176 = smul.u32 8, %s17
          %p177 = scmp.lt.s32.totalorder %s176, 15
          %s178 = scalar_select %p177, %s176, 15
          %s179 = smul.addr %s178, 8
          %s180 = scalar_lea.vmem %s1, %s179
          %s181 = smul.u32 8, %s17
        $region28: #{tpu_custom_call.1} parent=19 // pred_fallthru
          _
      $region20: #{tpu_custom_call.1} parent=5 // pred_fallthru
        _
      %p182 = scmp.le.s32.totalorder 1, %s17
      %p183 = scmp.lt.s32.totalorder %s17, 3
      %p184 = pnand %p182, %p183
      %p185 = pneg %p184
      // Predicated region
      $region29: #{tpu_custom_call.1} parent=5 // pred_check
        _
      $region30: #{tpu_custom_call.1} parent=5 // pred_check_branch
        %187 = sbr.rel (%p184) target = $region32
      $region31: #{tpu_custom_call.1} parent=5 // pred_region
        %s188 = ssub.s32 %s17, 1
        %s189 = smul.u32 8, %s22
        %p190 = scmp.lt.s32.totalorder %s189, 15
        %s191 = scalar_select %p190, %s189, 15
        %s192 = smul.addr %s191, 4
        %s193 = scalar_lea.vmem %s0, %s192
        %p194 = pneg %p43
        %p195 = pneg %p40
        %s196 = smul.u32 8, %s22
        %p197 = scmp.lt.s32.totalorder %s196, 15
        %s198 = scalar_select %p197, %s196, 15
        %s199 = smul.addr %s198, 8
        %s200 = scalar_lea.vmem %s1, %s199
        %p201 = pneg %p69
        %p202 = pneg %p66
        %p203 = pneg %p90
        %p204 = pneg %p87
        %p205 = pneg %p116
        %p206 = pneg %p113
        %s207 = sand.u32 %s103, 1
        %s208 = scalar_lea.sflag [#allocation3], %s207
        %s209 = sand.u32 %s103, 1
        %s210 = smul.addr %s209, 64
        %s211 = scalar_lea.vmem [#allocation2], %s210
        %p212 = pneg %p142
        %p213 = pneg %p139
        %s214 = sand.u32 %s129, 1
        %s215 = scalar_lea.sflag [#allocation5], %s214
        %s216 = sand.u32 %s129, 1
        %s217 = smul.addr %s216, 8
        %s218 = scalar_lea.vmem [#allocation4], %s217
        %s219 = smul.u32 8, %s22
        %p220 = scmp.lt.s32.totalorder %s219, 15
        %s221 = scalar_select %p220, %s219, 15
        %s222 = smul.addr %s221, 4
        %s223 = scalar_lea.vmem %s0, %s222
        %s224 = smul.u32 8, %s22
        %s225 = smul.u32 8, %s22
        %p226 = scmp.lt.s32.totalorder %s225, 15
        %s227 = scalar_select %p226, %s225, 15
        %s228 = smul.addr %s227, 8
        %s229 = scalar_lea.vmem %s1, %s228
        %s230 = smul.u32 8, %s22
        %s231 = smul.u32 8, %s22
        %v233 = vld [vmem:[%s223] sm:$0xf]
        %v234 = vld [vmem:[%s223 + $0x4] sm:$0xf]
        %v235 = vld [vmem:[%s223 + $0x8] sm:$0xf]
        %v236 = vld [vmem:[%s223 + $0xc] sm:$0xf]
        %v237 = vld [vmem:[%s223 + $0x10] sm:$0xf]
        %v238 = vld [vmem:[%s223 + $0x14] sm:$0xf]
        %v239 = vld [vmem:[%s223 + $0x18] sm:$0xf]
        %v240 = vld [vmem:[%s223 + $0x1c] sm:$0xf]
        %v241 = vld [vmem:[%s2] sm:$0xf]
        %v242 = vld [vmem:[%s2 + $0x4] sm:$0xf]
        %v243 = vld [vmem:[%s2 + $0x8] sm:$0xf]
        %v244 = vld [vmem:[%s2 + $0xc] sm:$0xf]
        %v245 = vld [vmem:[%s2 + $0x10] sm:$0xf]
        %v246 = vld [vmem:[%s2 + $0x14] sm:$0xf]
        %v247 = vld [vmem:[%s2 + $0x18] sm:$0xf]
        %v248 = vld [vmem:[%s2 + $0x1c] sm:$0xf]
        %v249 = vld [vmem:[%s2 + $0x20] sm:$0xf]
        %v250 = vld [vmem:[%s2 + $0x24] sm:$0xf]
        %v251 = vld [vmem:[%s2 + $0x28] sm:$0xf]
        %v252 = vld [vmem:[%s2 + $0x2c] sm:$0xf]
        %v253 = vld [vmem:[%s2 + $0x30] sm:$0xf]
        %v254 = vld [vmem:[%s2 + $0x34] sm:$0xf]
        %v255 = vld [vmem:[%s2 + $0x38] sm:$0xf]
        %v256 = vld [vmem:[%s2 + $0x3c] sm:$0xf]
        %v265 = vunpack.c.l.b16 %v233
        %v266 = vunpack.c.l.b16 %v234
        %v267 = vunpack.c.l.b16 %v235
        %v268 = vunpack.c.l.b16 %v236
        %v269 = vunpack.c.l.b16 %v237
        %v270 = vunpack.c.l.b16 %v238
        %v271 = vunpack.c.l.b16 %v239
        %v272 = vunpack.c.l.b16 %v240
        %v273 = vpack.c.b16 %v266, %v265
        %v274 = vpack.c.b16 %v268, %v267
        %v275 = vpack.c.b16 %v270, %v269
        %v276 = vpack.c.b16 %v272, %v271
        %v297 = vunpack.c.l.b16 %v241
        %v298 = vunpack.c.l.b16 %v242
        %v299 = vunpack.c.l.b16 %v243
        %v300 = vunpack.c.l.b16 %v244
        %v301 = vunpack.c.l.b16 %v245
        %v302 = vunpack.c.l.b16 %v246
        %v303 = vunpack.c.l.b16 %v247
        %v304 = vunpack.c.l.b16 %v248
        %v305 = vunpack.c.l.b16 %v249
        %v306 = vunpack.c.l.b16 %v250
        %v307 = vunpack.c.l.b16 %v251
        %v308 = vunpack.c.l.b16 %v252
        %v309 = vunpack.c.l.b16 %v253
        %v310 = vunpack.c.l.b16 %v254
        %v311 = vunpack.c.l.b16 %v255
        %v312 = vunpack.c.l.b16 %v256
        %v313 = vpack.c.b16 %v298, %v297
        %v314 = vpack.c.b16 %v300, %v299
        %v315 = vpack.c.b16 %v302, %v301
        %v316 = vpack.c.b16 %v304, %v303
        %v317 = vpack.c.b16 %v306, %v305
        %v318 = vpack.c.b16 %v308, %v307
        %v319 = vpack.c.b16 %v310, %v309
        %v320 = vpack.c.b16 %v312, %v311
        %329 = vmatprep.subr.bf16.mxu0 0
        %330 = vmatpush1.bf16.msra.mxu0 %v320
        %331 = vmatprep.subr.bf16.mxu0 0
        %332 = vmatpush1.bf16.msra.mxu0 %v319
        %333 = vmatprep.subr.bf16.mxu0 0
        %334 = vmatpush1.bf16.msra.mxu0 %v318
        %335 = vmatprep.subr.bf16.mxu0 0
        %336 = vmatpush1.bf16.msra.mxu0 %v317
        %337 = vmatprep.subr.bf16.mxu0 0
        %338 = vmatpush1.bf16.msra.mxu0 %v316
        %339 = vmatprep.subr.bf16.mxu0 0
        %340 = vmatpush1.bf16.msra.mxu0 %v315
        %341 = vmatprep.subr.bf16.mxu0 0
        %342 = vmatpush1.bf16.msra.mxu0 %v314
        %343 = vmatprep.subr.bf16.mxu0 0
        %344 = vmatpush1.bf16.msra.mxu0 %v313
        %345 = vmatprep.subr.bf16.mxu0 0
        %346 = vmatpush2.bf16.msra.mxu0 0
        %347 = vmatprep.subr.bf16.mxu0 0
        %348 = vmatpush2.bf16.msra.mxu0 0
        %349 = vmatprep.subr.bf16.mxu0 0
        %350 = vmatpush2.bf16.msra.mxu0 0
        %351 = vmatprep.subr.bf16.mxu0 0
        %352 = vmatpush2.bf16.msra.mxu0 0
        %353 = vmatprep.subr.bf16.mxu0 0
        %354 = vmatpush2.bf16.msra.mxu0 0
        %355 = vmatprep.subr.bf16.mxu0 0
        %356 = vmatpush2.bf16.msra.mxu0 0
        %357 = vmatprep.subr.bf16.mxu0 0
        %358 = vmatpush2.bf16.msra.mxu0 0
        %359 = vmatprep.subr.bf16.mxu0 0
        %360 = vmatpush2.bf16.msra.mxu0 0
        %361 = vmatprep.mubr.bf16.mxu0 0
        %362 = vmatmul.mubr.bf16.gmra.mxu0 %v273
        %v363 = vpop.f32.mrf.mxu0
        %v364 = vadd.f32 0.0, %v363
        %v365 = vpop.f32.mrf.mxu0
        %v366 = vpop.f32.mrf.mxu0
        %v367 = vadd.f32 0.0, %v366
        %v368 = vpop.f32.mrf.mxu0
        %369 = vmatprep.mubr.bf16.mxu0 0
        %370 = vmatmul.mubr.bf16.gmra.mxu0 %v274
        %v371 = vpop.f32.mrf.mxu0
        %v372 = vadd.f32 0.0, %v371
        %v373 = vpop.f32.mrf.mxu0
        %v374 = vpop.f32.mrf.mxu0
        %v375 = vadd.f32 0.0, %v374
        %v376 = vpop.f32.mrf.mxu0
        %377 = vmatprep.mubr.bf16.mxu0 0
        %378 = vmatmul.mubr.bf16.gmra.mxu0 %v275
        %v379 = vpop.f32.mrf.mxu0
        %v380 = vadd.f32 0.0, %v379
        %v381 = vpop.f32.mrf.mxu0
        %v382 = vpop.f32.mrf.mxu0
        %v383 = vadd.f32 0.0, %v382
        %v384 = vpop.f32.mrf.mxu0
        %385 = vmatprep.mubr.bf16.mxu0 0
        %386 = vmatmul.mubr.bf16.gmra.mxu0 %v276
        %v387 = vpop.f32.mrf.mxu0
        %v388 = vadd.f32 0.0, %v387
        %v389 = vpop.f32.mrf.mxu0
        %v390 = vpop.f32.mrf.mxu0
        %v391 = vadd.f32 0.0, %v390
        %v392 = vpop.f32.mrf.mxu0
        %393 = vdwg.mxu0
        %394 = vst [vmem:[%s211] sm:$0xff] %v364
        %395 = vst [vmem:[%s211 + $0x8] sm:$0xff] %v367
        %396 = vst [vmem:[%s211 + $0x10] sm:$0xff] %v372
        %397 = vst [vmem:[%s211 + $0x18] sm:$0xff] %v375
        %398 = vst [vmem:[%s211 + $0x20] sm:$0xff] %v380
        %399 = vst [vmem:[%s211 + $0x28] sm:$0xff] %v383
        %400 = vst [vmem:[%s211 + $0x30] sm:$0xff] %v388
        %401 = vst [vmem:[%s211 + $0x38] sm:$0xff] %v391
        %v402 = vld [vmem:[%s229] sm:$0xff]
        %v403 = vld [vmem:[%s229 + $0x8] sm:$0xff]
        %v404 = vld [vmem:[%s229 + $0x10] sm:$0xff]
        %v405 = vld [vmem:[%s229 + $0x18] sm:$0xff]
        %v406 = vld [vmem:[%s229 + $0x20] sm:$0xff]
        %v407 = vld [vmem:[%s229 + $0x28] sm:$0xff]
        %v408 = vld [vmem:[%s229 + $0x30] sm:$0xff]
        %v409 = vld [vmem:[%s229 + $0x38] sm:$0xff]
        %411 = vset.pattern.permute.xlu0 0
        %412 = vperm.xlu0 %411, %v402
        %v413 = vpop.permute.xlu0 %412
        %416 = vset.pattern.permute.xlu0 0
        %417 = vperm.xlu0 %416, %v403
        %v418 = vpop.permute.xlu0 %417
        %421 = vset.pattern.permute.xlu0 0
        %422 = vperm.xlu0 %421, %v404
        %v423 = vpop.permute.xlu0 %422
        %426 = vset.pattern.permute.xlu0 0
        %427 = vperm.xlu0 %426, %v405
        %v428 = vpop.permute.xlu0 %427
        %431 = vset.pattern.permute.xlu0 0
        %432 = vperm.xlu0 %431, %v406
        %v433 = vpop.permute.xlu0 %432
        %436 = vset.pattern.permute.xlu0 0
        %437 = vperm.xlu0 %436, %v407
        %v438 = vpop.permute.xlu0 %437
        %441 = vset.pattern.permute.xlu0 0
        %442 = vperm.xlu0 %441, %v408
        %v443 = vpop.permute.xlu0 %442
        %446 = vset.pattern.permute.xlu0 0
        %447 = vperm.xlu0 %446, %v409
        %v448 = vpop.permute.xlu0 %447
        %v450 = vmul.f32 %v364, %v413
        %v451 = vmul.f32 %v367, %v418
        %v452 = vmul.f32 %v372, %v423
        %v453 = vmul.f32 %v375, %v428
        %v454 = vmul.f32 %v380, %v433
        %v455 = vmul.f32 %v383, %v438
        %v456 = vmul.f32 %v388, %v443
        %v457 = vmul.f32 %v391, %v448
        %v458 = vrot.slane %v450, 4
        %v459 = vadd.f32 %v450, %v458
        %v460 = vrot.slane %v459, 2
        %v461 = vadd.f32 %v459, %v460
        %v462 = vrot.slane %v461, 1
        %v463 = vadd.f32 %v461, %v462
        %v464 = vrot.slane %v451, 4
        %v465 = vadd.f32 %v451, %v464
        %v466 = vrot.slane %v465, 2
        %v467 = vadd.f32 %v465, %v466
        %v468 = vrot.slane %v467, 1
        %v469 = vadd.f32 %v467, %v468
        %v470 = vrot.slane %v452, 4
        %v471 = vadd.f32 %v452, %v470
        %v472 = vrot.slane %v471, 2
        %v473 = vadd.f32 %v471, %v472
        %v474 = vrot.slane %v473, 1
        %v475 = vadd.f32 %v473, %v474
        %v476 = vrot.slane %v453, 4
        %v477 = vadd.f32 %v453, %v476
        %v478 = vrot.slane %v477, 2
        %v479 = vadd.f32 %v477, %v478
        %v480 = vrot.slane %v479, 1
        %v481 = vadd.f32 %v479, %v480
        %v482 = vrot.slane %v454, 4
        %v483 = vadd.f32 %v454, %v482
        %v484 = vrot.slane %v483, 2
        %v485 = vadd.f32 %v483, %v484
        %v486 = vrot.slane %v485, 1
        %v487 = vadd.f32 %v485, %v486
        %v488 = vrot.slane %v455, 4
        %v489 = vadd.f32 %v455, %v488
        %v490 = vrot.slane %v489, 2
        %v491 = vadd.f32 %v489, %v490
        %v492 = vrot.slane %v491, 1
        %v493 = vadd.f32 %v491, %v492
        %v494 = vrot.slane %v456, 4
        %v495 = vadd.f32 %v456, %v494
        %v496 = vrot.slane %v495, 2
        %v497 = vadd.f32 %v495, %v496
        %v498 = vrot.slane %v497, 1
        %v499 = vadd.f32 %v497, %v498
        %v500 = vrot.slane %v457, 4
        %v501 = vadd.f32 %v457, %v500
        %v502 = vrot.slane %v501, 2
        %v503 = vadd.f32 %v501, %v502
        %v504 = vrot.slane %v503, 1
        %v505 = vadd.f32 %v503, %v504
        %vm514 = vcmask 1041409
        %v515 = vsel %vm514, %v469, %v463
        %vm516 = vcmask 1042434
        %v517 = vsel %vm516, %v475, %v515
        %vm518 = vcmask 1043459
        %v519 = vsel %vm518, %v481, %v517
        %vm520 = vcmask 1044484
        %v521 = vsel %vm520, %v487, %v519
        %vm522 = vcmask 1045509
        %v523 = vsel %vm522, %v493, %v521
        %vm524 = vcmask 1046534
        %v525 = vsel %vm524, %v499, %v523
        %vm526 = vcmask 1047559
        %v527 = vsel %vm526, %v505, %v525
        %529 = vst [vmem:[%s218] sm:$0xff] %v527
        %s530 = sand.u32 %s103, 1
        %s531 = scalar_lea.sflag [#allocation3], %s530
        %s532 = sand.u32 %s103, 1
        %s533 = smul.addr %s532, 64
        %s534 = scalar_lea.vmem [#allocation2], %s533
        %s535 = sand.u32 %s129, 1
        %s536 = scalar_lea.sflag [#allocation5], %s535
        %s537 = sand.u32 %s129, 1
        %s538 = smul.addr %s537, 8
        %s539 = scalar_lea.vmem [#allocation4], %s538
        // Predicated region
        $region33: #{tpu_custom_call.1} parent=31 // pred_check
          %p540 = pneg %p113
        $region34: #{tpu_custom_call.1} parent=31 // pred_check_branch
          %542 = sbr.rel (%p540) target = $region36
        $region35: #{tpu_custom_call.1} parent=31 // pred_region
          %s543 = smul.u32 8, %s22
          %s545 = ssub.s32 1024, 1024
          %546 = vsyncadd %s531, %s545
          %s547 = smul.addr %s543, 128
          %s548 = scalar_lea.hbm %s3, %s547
          %s549 = sshll.u32 %s534, 4
          %s550 = int_to_ptr.vmem [resolvable:$true] %s549
          %555 = dma.vmem_to_hbm [thread:$0]  %s550, 1024, %s548, %s531, 128, 128, 8
        $region36: #{tpu_custom_call.1} parent=31 // pred_fallthru
          _
        // Predicated region
        $region37: #{tpu_custom_call.1} parent=31 // pred_check
          %p556 = pneg %p139
        $region38: #{tpu_custom_call.1} parent=31 // pred_check_branch
          %558 = sbr.rel (%p556) target = $region40
        $region39: #{tpu_custom_call.1} parent=31 // pred_region
          %s560 = ssub.s32 128, 128
          %561 = vsyncadd %s536, %s560
          %s562 = smul.addr %s22, 128
          %s563 = scalar_lea.hbm %s4, %s562
          %s565 = sshll.u32 %s539, 4
          %s566 = int_to_ptr.vmem [resolvable:$true] %s565
          %568 = dma.vmem_to_hbm [thread:$0]  %s566, 128, %s563, %s536
        $region40: #{tpu_custom_call.1} parent=31 // pred_fallthru
          _
      $region32: #{tpu_custom_call.1} parent=5 // pred_fallthru
        _
      %p569 = scmp.le.s32.totalorder 2, %s17
      // Predicated region
      $region41: #{tpu_custom_call.1} parent=5 // pred_check
        %p570 = pneg %p569
      $region42: #{tpu_custom_call.1} parent=5 // pred_check_branch
        %572 = sbr.rel (%p570) target = $region44
      $region43: #{tpu_custom_call.1} parent=5 // pred_region
        %s573 = ssub.s32 %s17, 2
        // Predicated region
        $region45: #{tpu_custom_call.1} parent=43 // pred_check
          %p574 = pneg %p119
        $region46: #{tpu_custom_call.1} parent=43 // pred_check_branch
          %576 = sbr.rel (%p574) target = $region48
        $region47: #{tpu_custom_call.1} parent=43 // pred_region
          %s577 = sand.u32 %s104, 1
          %s578 = scalar_lea.sflag [#allocation3], %s577
          %s579 = sand.u32 %s104, 1
          %s580 = smul.addr %s579, 64
          %s581 = scalar_lea.vmem [#allocation2], %s580
          %582 = dma.done %s578, 1024
        $region48: #{tpu_custom_call.1} parent=43 // pred_fallthru
          _
        // Predicated region
        $region49: #{tpu_custom_call.1} parent=43 // pred_check
          %p583 = pneg %p145
        $region50: #{tpu_custom_call.1} parent=43 // pred_check_branch
          %585 = sbr.rel (%p583) target = $region52
        $region51: #{tpu_custom_call.1} parent=43 // pred_region
          %s586 = sand.u32 %s130, 1
          %s587 = scalar_lea.sflag [#allocation5], %s586
          %s588 = sand.u32 %s130, 1
          %s589 = smul.addr %s588, 8
          %s590 = scalar_lea.vmem [#allocation4], %s589
          %591 = dma.done %s587, 128
        $region52: #{tpu_custom_call.1} parent=43 // pred_fallthru
          _
      $region44: #{tpu_custom_call.1} parent=5 // pred_fallthru
        _
    $region6: #{tpu_custom_call.1} parent=1 // loop_footer
      %s21 = sadd.s32 1, %s17
    $region7: #{tpu_custom_call.1} parent=1 // loop_footer_branch
      %16 = sbr.rel target = $region3
    $region8: #{tpu_custom_call.1} parent=1 // loop_exit
      _
    %592 = vsyncpa [#allocation3], 1
    %s593 = scalar_lea.sflag [#allocation3], 1
    %594 = vsyncpa %s593, 1
    %595 = vsyncpa [#allocation5], 1
    %s596 = scalar_lea.sflag [#allocation5], 1
    %597 = vsyncpa %s596, 1

</llo_original>
